<compile_context>
chip_gen: v6e
topology: v6e:2x2x1
jax: 0.10.0
libtpu: 0.0.40
codegen_flags: <defaults>
</compile_context>

<pallas_src>
import jax
import jax.numpy as jnp
from jax.experimental import pallas as pl
from jax.experimental.pallas import tpu as pltpu

NEG_SLOPE = 0.01
_SMALL_BYTES = 2 << 20  # single-block (grid-less) threshold


def _leaky_relu_kernel(x_ref, o_ref):
    x = x_ref[...]
    # LeakyReLU: x if x >= 0 else negative_slope * x (pure VPU elementwise).
    o_ref[...] = jnp.where(x >= 0, x, x * jnp.asarray(NEG_SLOPE, x.dtype))


def _round_up(x, m):
    return ((x + m - 1) // m) * m


def _vmem_budget():
    """Per-generation (tile_target_bytes, vmem_limit_bytes)."""
    cap = 64 << 20  # conservative fallback = v7x per-TC VMEM
    try:
        info = pltpu.get_tpu_info()
        cap = int(getattr(info, "vmem_capacity_bytes", cap))
    except Exception:
        pass
    # v5e/v6e (128 MiB VMEM): 16 MiB tiles, 72 MiB scoped limit.
    # v7x     (64 MiB VMEM):   8 MiB tiles, 40 MiB scoped limit.
    tile_target = min(cap // 8, 16 << 20)
    vmem_limit = min(4 * tile_target + (8 << 20), cap * 3 // 4)
    return tile_target, vmem_limit


def _choose_cols(total, max_cols=4096):
    """Largest multiple-of-128 divisor of `total`, capped at max_cols."""
    for k in range(min(max_cols // 128, max(total // 128, 1)), 0, -1):
        cols = 128 * k
        if total % cols == 0:
            return cols
    return None


def leaky_relu_pallas(x, *, donate_input=False):
    """Applies LeakyReLU(0.01) elementwise. x: any shape, float dtype."""
    orig_shape = x.shape
    dtype = x.dtype
    itemsize = jnp.dtype(dtype).itemsize
    total = x.size
    total_bytes = total * itemsize
    sublane = {4: 8, 2: 16, 1: 32}.get(itemsize, 8)
    io_alias = {0: 0} if donate_input else {}

    cols = _choose_cols(total)

    # ---------- Small path: one untiled block, no grid, no pipeline. ----------
    if total_bytes <= _SMALL_BYTES:
        if cols is not None:
            x_in = x.reshape(total // cols, cols)  # lane-dense slab (free bitcast)
        else:
            x_in = x  # full-array block is exempt from the (8,128) rule
        out = pl.pallas_call(
            _leaky_relu_kernel,
            out_shape=jax.ShapeDtypeStruct(x_in.shape, dtype),
            input_output_aliases=io_alias,
        )(x_in)
        return out.reshape(orig_shape)

    # ---------- Large path: lane-dense slab streamed with big tiles. ----------
    tile_target, vmem_limit = _vmem_budget()

    needs_pad = cols is None
    if needs_pad:
        # Rare fallback (total not divisible by 128): zero-pad to a wide slab.
        # Valid only because LeakyReLU(0) == 0.
        cols = 512
        padded_total = _round_up(total, cols)
        flat = jnp.pad(x.reshape(-1), (0, padded_total - total))
        rows = padded_total // cols
        x2d = flat.reshape(rows, cols)
        io_alias = {}  # aliasing a padded temp buys nothing
    else:
        rows = total // cols
        x2d = x.reshape(rows, cols)  # contiguous -> zero-copy reshape

    row_bytes = cols * itemsize
    # Largest sublane-aligned tile within the per-generation target.
    tile_rows = max(sublane, (tile_target // row_bytes) // sublane * sublane)
    tile_rows = min(tile_rows, _round_up(rows, sublane))
    # Keep >= 4 grid steps so both v7x TensorCores get work and DMA overlaps.
    min_steps = 4
    if pl.cdiv(rows, tile_rows) < min_steps and rows > min_steps * sublane:
        tile_rows = max(sublane, _round_up(pl.cdiv(rows, min_steps), sublane))
    grid = (pl.cdiv(rows, tile_rows),)  # trailing partial block is masked by Pallas

    out2d = pl.pallas_call(
        _leaky_relu_kernel,
        out_shape=jax.ShapeDtypeStruct((rows, cols), dtype),
        grid_spec=pltpu.PrefetchScalarGridSpec(
            num_scalar_prefetch=0,
            grid=grid,
            in_specs=[pl.BlockSpec((tile_rows, cols), lambda i: (i, 0))],
            out_specs=pl.BlockSpec((tile_rows, cols), lambda i: (i, 0)),
        ),
        compiler_params=pltpu.CompilerParams(
            dimension_semantics=("parallel",),  # shard rows over v7x's 2 TCs
            vmem_limit_bytes=vmem_limit,
        ),
        input_output_aliases=io_alias,
    )(x2d)

    if needs_pad:
        return out2d.reshape(-1)[:total].reshape(orig_shape)
    return out2d.reshape(orig_shape)


if __name__ == "__main__":
    key = jax.random.PRNGKey(0)

    # Small NCHW input consistent with the module (elementwise op).
    x = jax.random.normal(key, (2, 4, 16, 16), dtype=jnp.float32)
    y = leaky_relu_pallas(x)
    jax.block_until_ready(y)
    y_ref = jnp.where(x >= 0, x, NEG_SLOPE * x)
    assert y.shape == x.shape and y.dtype == x.dtype
    assert jnp.allclose(y, y_ref, atol=1e-6, rtol=1e-6)

    # Also exercise the tiled (large-input) streaming path once.
    xl = jax.random.normal(jax.random.PRNGKey(1), (64, 4, 128, 128), dtype=jnp.float32)
    yl = leaky_relu_pallas(xl)
    jax.block_until_ready(yl)
    yl_ref = jnp.where(xl >= 0, xl, NEG_SLOPE * xl)
    assert yl.shape == xl.shape and yl.dtype == xl.dtype
    assert jnp.allclose(yl, yl_ref, atol=1e-6, rtol=1e-6)

    print("KERNEL_OK")
</pallas_src>

<mosaic_0001>
module attributes {stable_mosaic.version = 11 : i64} {
  func.func @_leaky_relu_kernel(%arg0: memref<1x2048xf32, #tpu.memory_space<vmem>>, %arg1: memref<1x2048xf32, #tpu.memory_space<vmem>>) attributes {dimension_semantics = [], scalar_prefetch = 0 : i64, scratch_operands = 0 : i64, tpu.core_type = #tpu.core_type<tc>} {
    %c0 = arith.constant 0 : index
    %c0_0 = arith.constant 0 : index
    %0 = vector.load %arg0[%c0, %c0_0] : memref<1x2048xf32, #tpu.memory_space<vmem>>, vector<1x2048xf32>
    %cst = arith.constant 0.000000e+00 : f32
    %1 = vector.broadcast %cst : f32 to vector<1x2048xf32>
    %2 = arith.cmpf oge, %0, %1 : vector<1x2048xf32>
    %cst_1 = arith.constant 0.00999999977 : f32
    %3 = vector.broadcast %cst_1 : f32 to vector<1x2048xf32>
    %4 = arith.mulf %0, %3 : vector<1x2048xf32>
    %5 = arith.select %2, %0, %4 : vector<1x2048xi1>, vector<1x2048xf32>
    %c0_2 = arith.constant 0 : index
    %c0_3 = arith.constant 0 : index
    %6 = vector.load %arg1[%c0_2, %c0_3] : memref<1x2048xf32, #tpu.memory_space<vmem>>, vector<1x2048xf32>
    tpu.vector_store %arg1[%c0_2, %c0_3], %5 {strides = array<i32>} : memref<1x2048xf32, #tpu.memory_space<vmem>>, vector<1x2048xf32>,
    return
  }
}

</mosaic_0001>

<llo_original>
// kernel: tpu_custom_call.1
$region0: #{tpu_custom_call.1}
  #allocation0 [shape = 'u32[]', space=smem, size = 0x4, offset = 0x4, fixed_abs, tag = 'smem constant byte address 0x4 - core index']
  #allocation1 [shape = 'u32[144,128]{1,0:T(1,128)}', space=vmem, size = 0x12000, scoped, tag = 'internal scratch']
  %s0 = inlined_call_operand.hbm [shape: f32[1,2048], index: 0, kind: input, shape index: {}]
  %s1 = inlined_call_operand.hbm [shape: f32[1,2048], index: 1, kind: output, shape index: {}]
  %s2 = sld [smem:[#allocation0]]
  $region18: #{tpu_custom_call.1} parent=0
    _
  %s4 = ssub.s32 1, %s2
  %s5 = scalar_select 0, %s4, %s2
  $region1: #{tpu_custom_call.1} parent=0
    #allocation2 [shape = 'u8[8192]{0}', space=vmem, size = 0x2000, scoped, tag = 'input window, operand 0, single buffered']
    #allocation3 [shape = 's32[1]{0}', space=sflag, size = 0x4, scoped, tag = 'scoped memory for tpu_custom_call.1']
    #allocation4 [shape = 's32[1]{0}', space=sflag, size = 0x4, scoped, tag = 'scoped memory for tpu_custom_call.1']
    #allocation5 [shape = 'u8[8192]{0}', space=vmem, size = 0x2000, scoped, tag = 'output window, operand 0, single buffered']
    %6 = vsyncpa [#allocation3], 0
    %7 = vsyncpa [#allocation4], 0
    // Predicated region
    $region2: #{tpu_custom_call.1} parent=1 // pred_check
      _
    $region3: #{tpu_custom_call.1} parent=1 // pred_check_branch
      %9 = sbr.rel (0) target = $region5
    $region4: #{tpu_custom_call.1} parent=1 // pred_region
      %s11 = ssub.s32 256, 256
      %12 = vsyncadd [#allocation3], %s11
      %s14 = sshll.u32 [#allocation2], 4
      %s15 = int_to_ptr.vmem [resolvable:$true] %s14
      %17 = dma.hbm_to_vmem [thread:$0]  %s0, 256, %s15, [#allocation3]
    $region5: #{tpu_custom_call.1} parent=1 // pred_fallthru
      _
    // Predicated region
    $region6: #{tpu_custom_call.1} parent=1 // pred_check
      _
    $region7: #{tpu_custom_call.1} parent=1 // pred_check_branch
      %19 = sbr.rel (0) target = $region9
    $region8: #{tpu_custom_call.1} parent=1 // pred_region
      %20 = dma.done [#allocation3], 256
    $region9: #{tpu_custom_call.1} parent=1 // pred_fallthru
      _
    %v21 = vld [vmem:[#allocation2] sm:$0xff]
    %v22 = vld [vmem:[#allocation2 + $0x8] sm:$0xff]
    %vm23 = vcmp.ge.f32.partialorder %v21, 0.0
    %vm24 = vcmp.ge.f32.partialorder %v22, 0.0
    %v25 = vmul.f32 %v21, 0.01
    %v26 = vmul.f32 %v22, 0.01
    %v27 = vsel %vm23, %v21, %v25
    %v28 = vsel %vm24, %v22, %v26
    %29 = vst [vmem:[#allocation5] sm:$0xff] %v27
    %30 = vst [vmem:[#allocation5 + $0x8] sm:$0xff] %v28
    // Predicated region
    $region10: #{tpu_custom_call.1} parent=1 // pred_check
      _
    $region11: #{tpu_custom_call.1} parent=1 // pred_check_branch
      %32 = sbr.rel (0) target = $region13
    $region12: #{tpu_custom_call.1} parent=1 // pred_region
      %s34 = ssub.s32 256, 256
      %35 = vsyncadd [#allocation4], %s34
      %s37 = sshll.u32 [#allocation5], 4
      %s38 = int_to_ptr.vmem [resolvable:$true] %s37
      %40 = dma.vmem_to_hbm [thread:$0]  %s38, 256, %s1, [#allocation4]
    $region13: #{tpu_custom_call.1} parent=1 // pred_fallthru
      _
    // Predicated region
    $region14: #{tpu_custom_call.1} parent=1 // pred_check
      _
    $region15: #{tpu_custom_call.1} parent=1 // pred_check_branch
      %42 = sbr.rel (0) target = $region17
    $region16: #{tpu_custom_call.1} parent=1 // pred_region
      %43 = dma.done [#allocation4], 256
    $region17: #{tpu_custom_call.1} parent=1 // pred_fallthru
      _
    %44 = vsyncpa [#allocation3], 1
    %45 = vsyncpa [#allocation4], 1

</llo_original>
